<compile_context>
chip_gen: v7x
topology: tpu7x:2x2x1
jax: 0.10.0
libtpu: 0.0.40
codegen_flags: <defaults>
</compile_context>

<pallas_src>
import jax
import jax.numpy as jnp
import numpy as np
from jax.experimental import pallas as pl
from jax.experimental.pallas import tpu as pltpu


# ----------------------------------------------------------------------------
# Packed-slab layout (all row offsets are multiples of 8 so every in-kernel
# slice is sublane-aligned).
# ----------------------------------------------------------------------------
K1 = 168                 # conv1 contraction depth: 3*54 = 162, padded to 168
OFF_W1 = 0               # [168, 128] conv1 banded weight (3 kh taps stacked on K)
OFF_B1 = 168             # [1, 128]  conv1 bias (tiled over 16 output cols)
OFF_W2 = 176             # 3 x [96, 128] conv2 banded weights (kh taps)
OFF_B2 = 464             # [1, 128]  conv2 bias (tiled over 6 output cols)
OFF_BF1 = 472            # [1, 128]  fc1 bias
OFF_WF2 = 480            # [128, 128] fc2 weight (out padded 64 -> 128)
OFF_BF2 = 608            # [1, 128]  fc2 bias
OFF_WF3 = 616            # [128, 128] fc3 weight (in 64 -> 128, out 4 -> 128)
OFF_BF3 = 744            # [1, 128]  fc3 bias
SLAB_ROWS = 752


# ----------------------------------------------------------------------------
# Kernel: full forward pass, everything fused, 7 MXU matmuls total.
# ----------------------------------------------------------------------------
def net_kernel(x_ref, slab_ref, wf1_ref, o_ref):
    f32 = jnp.float32
    R = x_ref.shape[0]                    # B*16 (one row per conv1 output row)

    def mm(a, b):
        return jnp.dot(a, b, preferred_element_type=f32)

    # ---- conv1 + bias + ReLU: single matmul on the im2row-expanded input --
    y1 = jnp.maximum(mm(x_ref[...], slab_ref[OFF_W1:OFF_W1 + K1, :])
                     + slab_ref[OFF_B1:OFF_B1 + 1, :], 0.0)          # [R, 128]

    # ---- pool1 (2x2 max) as two shifted elementwise maxima ----------------
    # lanes: w*6+c ; valid pooled cols land at lanes 12j+c.
    c1 = jnp.maximum(y1[:, 0:96], y1[:, 6:102])                      # col pairs
    r1 = jnp.maximum(c1[0:R - 1, :], c1[1:R, :])                     # row pairs [R-1, 96]
    # valid pooled rows stay interleaved at rows b*16 + 2i.

    # ---- conv2 + bias + ReLU: 3 banded taps, stride-2 row shifts -----------
    # (stage-1 column compaction is folded into the banded weights host-side)
    m2 = R - 5
    y2 = (mm(r1[0:m2, :],      slab_ref[OFF_W2:OFF_W2 + 96, :])
          + mm(r1[2:m2 + 2, :], slab_ref[OFF_W2 + 96:OFF_W2 + 192, :])
          + mm(r1[4:m2 + 4, :], slab_ref[OFF_W2 + 192:OFF_W2 + 288, :]))
    y2 = jnp.maximum(y2 + slab_ref[OFF_B2:OFF_B2 + 1, :], 0.0)       # [R-5, 128]

    # ---- pool2 (2x2 max), same shifted-max trick ---------------------------
    c2 = jnp.maximum(y2[:, 0:72], y2[:, 12:84])                      # [R-5, 72]
    r2 = jnp.maximum(c2[0:m2 - 2, :], c2[2:m2, :])                   # [R-7, 72]
    # valid pooled rows at b*16 + 4*hp, valid lanes at 24*jp + c.

    # ---- fc1: NCHW flatten + col compaction folded into wf1 (3x128 blocks);
    #      the hp-sum is two shifted, 128-aligned lane-block adds ------------
    zw = mm(r2, wf1_ref[...])                                         # [R-7, 384]
    m3 = R - 15
    a = (zw[0:m3, 0:128] + zw[4:m3 + 4, 128:256] + zw[8:m3 + 8, 256:384])
    h = jnp.maximum(a + slab_ref[OFF_BF1:OFF_BF1 + 1, :], 0.0)        # [R-15, 128]

    # ---- fc2 + ReLU, fc3 (weights zero-padded to 128 lanes) ----------------
    h = jnp.maximum(mm(h, slab_ref[OFF_WF2:OFF_WF2 + 128, :])
                    + slab_ref[OFF_BF2:OFF_BF2 + 1, :], 0.0)
    o_ref[...] = (mm(h, slab_ref[OFF_WF3:OFF_WF3 + 128, :])
                  + slab_ref[OFF_BF3:OFF_BF3 + 1, :]).astype(o_ref.dtype)
    # valid logits live in rows b*16, lanes 0:4.


# ----------------------------------------------------------------------------
# Wrapper
# ----------------------------------------------------------------------------
def _full_spec(shape):
    nd = len(shape)
    return pl.BlockSpec(shape, lambda *_: (0,) * nd)


def net_pallas(x_exp, slab, wf1cat):
    R = x_exp.shape[0]
    out_rows = R - 15
    flops = 2 * (R * K1 * 128 + 3 * (R - 5) * 96 * 128
                 + (R - 7) * 72 * 384 + 2 * out_rows * 128 * 128)
    bytes_accessed = 4 * (x_exp.size + slab.size + wf1cat.size + out_rows * 128)
    return pl.pallas_call(
        net_kernel,
        out_shape=jax.ShapeDtypeStruct((out_rows, 128), jnp.float32),
        grid=(1,),
        in_specs=[_full_spec(x_exp.shape), _full_spec(slab.shape),
                  _full_spec(wf1cat.shape)],
        out_specs=_full_spec((out_rows, 128)),
        compiler_params=pltpu.CompilerParams(
            dimension_semantics=("arbitrary",)),
        cost_estimate=pl.CostEstimate(flops=flops, transcendentals=0,
                                      bytes_accessed=bytes_accessed),
    )(x_exp, slab, wf1cat)


@jax.jit
def net_forward(x_nchw, params):
    slab, wf1cat = params
    B = x_nchw.shape[0]
    # One-time boundary glue (XLA): NCHW -> folded rows, im2row over kh only,
    # so conv1 becomes a single matmul inside the kernel.
    x = jnp.transpose(x_nchw, (0, 2, 3, 1)).astype(jnp.float32)       # [B,18,18,3]
    x2d = x.reshape(B, 18, 54)
    x_exp = jnp.concatenate([x2d[:, 0:16], x2d[:, 1:17], x2d[:, 2:18]], axis=-1)
    x_exp = jnp.pad(x_exp.reshape(B * 16, 162), ((0, 0), (0, K1 - 162)))
    out_full = net_pallas(x_exp, slab, wf1cat)                         # [B*16-15,128]
    return out_full[::16, :4]                                          # rows b*16


# ----------------------------------------------------------------------------
# Host-side parameter packing (PyTorch layouts -> 2 kernel slabs)
# ----------------------------------------------------------------------------
def build_params(torch_params):
    (w1, b1, w2, b2, wf1, bf1, wf2, bf2, wf3, bf3) = [
        np.asarray(p, np.float32) for p in torch_params]

    slab = np.zeros((SLAB_ROWS, 128), np.float32)

    # conv1 banded weight: row = dh*54 + wi*3 + ci ; col = wo*6 + co.
    for dh in range(3):
        for dw in range(3):
            for wo in range(16):
                wi = wo + dw
                r0 = OFF_W1 + dh * 54 + wi * 3
                slab[r0:r0 + 3, wo * 6:wo * 6 + 6] = w1[:, :, dh, dw].T
    slab[OFF_B1, :96] = np.tile(b1, 16)

    # conv2 banded weights (per kh tap).  Input rows live at the UNcompacted
    # stage-1 lane layout 12*wi + ci (the pool1 column compaction is folded
    # in by zeroing rows with ci >= 6); cols = wo*12 + co.
    for dh in range(3):
        base = OFF_W2 + dh * 96
        for dw in range(3):
            for wo in range(6):
                wi = wo + dw
                r0 = base + 12 * wi
                slab[r0:r0 + 6, wo * 12:wo * 12 + 12] = w2[:, :, dh, dw].T
    slab[OFF_B2, :72] = np.tile(b2, 6)

    slab[OFF_BF1, :] = bf1
    slab[OFF_WF2:OFF_WF2 + 128, :64] = wf2.T
    slab[OFF_BF2, :64] = bf2
    slab[OFF_WF3:OFF_WF3 + 64, :4] = wf3.T
    slab[OFF_BF3, :4] = bf3

    # fc1 weight: pool2 column compaction + torch's NCHW .view(-1, 108) row
    # permutation folded in; one 128-lane block per pooled row hp.
    wf1cat = np.zeros((72, 3 * 128), np.float32)
    for hp in range(3):
        for jp in range(3):
            for co in range(12):
                wf1cat[24 * jp + co, hp * 128:(hp + 1) * 128] = \
                    wf1[:, co * 9 + hp * 3 + jp]

    return jnp.asarray(slab), jnp.asarray(wf1cat)


# ----------------------------------------------------------------------------
# Pure-JAX reference (PyTorch-layout weights) for validation
# ----------------------------------------------------------------------------
def reference_forward(x_nchw, torch_params):
    (w1, b1, w2, b2, wf1, bf1, wf2, bf2, wf3, bf3) = torch_params
    dn = ("NCHW", "OIHW", "NCHW")

    def stage(x, w, b):
        y = jax.lax.conv_general_dilated(x, w, (1, 1), "VALID",
                                         dimension_numbers=dn)
        y = jnp.maximum(y + b.reshape(1, -1, 1, 1), 0.0)
        return jax.lax.reduce_window(y, -jnp.inf, jax.lax.max,
                                     (1, 1, 2, 2), (1, 1, 2, 2), "VALID")

    h = stage(x_nchw, w1, b1)
    h = stage(h, w2, b2)
    flat = h.reshape(h.shape[0], -1)       # NCHW flatten == torch .view
    h = jnp.maximum(flat @ wf1.T + bf1, 0.0)
    h = jnp.maximum(h @ wf2.T + bf2, 0.0)
    return h @ wf3.T + bf3


if __name__ == "__main__":
    key = jax.random.PRNGKey(0)
    ks = jax.random.split(key, 11)
    B = 2
    # conv1 needs an 18x18 input so that the 12*3*3 flatten matches fc1.
    x_nchw = jax.random.normal(ks[0], (B, 3, 18, 18), jnp.float32)

    torch_params = (
        jax.random.normal(ks[1], (6, 3, 3, 3), jnp.float32) * 0.2,    # conv1.w (OIHW)
        jax.random.normal(ks[2], (6,), jnp.float32) * 0.1,            # conv1.b
        jax.random.normal(ks[3], (12, 6, 3, 3), jnp.float32) * 0.2,   # conv2.w
        jax.random.normal(ks[4], (12,), jnp.float32) * 0.1,           # conv2.b
        jax.random.normal(ks[5], (128, 108), jnp.float32) * 0.05,     # fc1.w (out,in)
        jax.random.normal(ks[6], (128,), jnp.float32) * 0.05,         # fc1.b
        jax.random.normal(ks[7], (64, 128), jnp.float32) * 0.05,      # fc2.w
        jax.random.normal(ks[8], (64,), jnp.float32) * 0.05,          # fc2.b
        jax.random.normal(ks[9], (4, 64), jnp.float32) * 0.05,        # fc3.w
        jax.random.normal(ks[10], (4,), jnp.float32) * 0.05,          # fc3.b
    )
    params = build_params(torch_params)

    out = jax.block_until_ready(net_forward(x_nchw, params))
    ref = jax.block_until_ready(reference_forward(x_nchw, torch_params))
    assert out.shape == (B, 4), out.shape
    assert jnp.allclose(out, ref, rtol=1e-3, atol=1e-3), (out, ref)
    print("KERNEL_OK")
</pallas_src>

<mosaic_0001>
module attributes {stable_mosaic.version = 11 : i64} {
  func.func @net_kernel(%arg0: i32, %arg1: memref<32x168xf32, #tpu.memory_space<vmem>>, %arg2: memref<752x128xf32, #tpu.memory_space<vmem>>, %arg3: memref<72x384xf32, #tpu.memory_space<vmem>>, %arg4: memref<17x128xf32, #tpu.memory_space<vmem>>) attributes {dimension_semantics = [#tpu.dimension_semantics<arbitrary>], iteration_bounds = array<i64: 1>, scalar_prefetch = 0 : i64, scratch_operands = 0 : i64, tpu.core_type = #tpu.core_type<tc>, window_params = [{pipeline_mode = #tpu.pipeline_mode<synchronous>, transform_indices = @transform_0, window_bounds = array<i64: 32, 168>}, {pipeline_mode = #tpu.pipeline_mode<synchronous>, transform_indices = @transform_1, window_bounds = array<i64: 752, 128>}, {pipeline_mode = #tpu.pipeline_mode<synchronous>, transform_indices = @transform_2, window_bounds = array<i64: 72, 384>}, {pipeline_mode = #tpu.pipeline_mode<synchronous>, transform_indices = @transform_3, window_bounds = array<i64: 17, 128>}]} {
    %c0 = arith.constant 0 : index
    %c0_0 = arith.constant 0 : index
    %0 = vector.load %arg1[%c0, %c0_0] : memref<32x168xf32, #tpu.memory_space<vmem>>, vector<32x168xf32>
    %c0_1 = arith.constant 0 : index
    %c0_2 = arith.constant 0 : index
    %1 = vector.load %arg2[%c0_1, %c0_2] : memref<752x128xf32, #tpu.memory_space<vmem>>, vector<168x128xf32>
    %cst = arith.constant dense<0.000000e+00> : vector<32x128xf32>
    %2 = tpu.matmul %0, %1, %cst {dimension_numbers = #tpu.dot_dimension_numbers<[1], [0], [0], [1], [0, 0, 1, 1], [], []>} : vector<32x168xf32>, vector<168x128xf32>, vector<32x128xf32> -> vector<32x128xf32>
    %c168 = arith.constant 168 : index
    %c0_3 = arith.constant 0 : index
    %3 = vector.load %arg2[%c168, %c0_3] : memref<752x128xf32, #tpu.memory_space<vmem>>, vector<1x128xf32>
    %4 = vector.broadcast %3 : vector<1x128xf32> to vector<32x128xf32>
    %5 = arith.addf %2, %4 : vector<32x128xf32>
    %cst_4 = arith.constant 0.000000e+00 : f32
    %6 = vector.broadcast %cst_4 : f32 to vector<32x128xf32>
    %7 = arith.maximumf %5, %6 : vector<32x128xf32>
    %8 = vector.extract_strided_slice %7 {offsets = [0, 0], sizes = [32, 96], strides = [1, 1]} : vector<32x128xf32> to vector<32x96xf32>
    %9 = vector.extract_strided_slice %7 {offsets = [0, 6], sizes = [32, 96], strides = [1, 1]} : vector<32x128xf32> to vector<32x96xf32>
    %10 = arith.maximumf %8, %9 : vector<32x96xf32>
    %11 = vector.extract_strided_slice %10 {offsets = [0, 0], sizes = [31, 96], strides = [1, 1]} : vector<32x96xf32> to vector<31x96xf32>
    %12 = vector.extract_strided_slice %10 {offsets = [1, 0], sizes = [31, 96], strides = [1, 1]} : vector<32x96xf32> to vector<31x96xf32>
    %13 = arith.maximumf %11, %12 : vector<31x96xf32>
    %14 = vector.extract_strided_slice %13 {offsets = [0, 0], sizes = [27, 96], strides = [1, 1]} : vector<31x96xf32> to vector<27x96xf32>
    %c176 = arith.constant 176 : index
    %c0_5 = arith.constant 0 : index
    %15 = vector.load %arg2[%c176, %c0_5] : memref<752x128xf32, #tpu.memory_space<vmem>>, vector<96x128xf32>
    %cst_6 = arith.constant dense<0.000000e+00> : vector<27x128xf32>
    %16 = tpu.matmul %14, %15, %cst_6 {dimension_numbers = #tpu.dot_dimension_numbers<[1], [0], [0], [1], [0, 0, 1, 1], [], []>} : vector<27x96xf32>, vector<96x128xf32>, vector<27x128xf32> -> vector<27x128xf32>
    %17 = vector.extract_strided_slice %13 {offsets = [2, 0], sizes = [27, 96], strides = [1, 1]} : vector<31x96xf32> to vector<27x96xf32>
    %c272 = arith.constant 272 : index
    %c0_7 = arith.constant 0 : index
    %18 = vector.load %arg2[%c272, %c0_7] : memref<752x128xf32, #tpu.memory_space<vmem>>, vector<96x128xf32>
    %cst_8 = arith.constant dense<0.000000e+00> : vector<27x128xf32>
    %19 = tpu.matmul %17, %18, %cst_8 {dimension_numbers = #tpu.dot_dimension_numbers<[1], [0], [0], [1], [0, 0, 1, 1], [], []>} : vector<27x96xf32>, vector<96x128xf32>, vector<27x128xf32> -> vector<27x128xf32>
    %20 = arith.addf %16, %19 : vector<27x128xf32>
    %21 = vector.extract_strided_slice %13 {offsets = [4, 0], sizes = [27, 96], strides = [1, 1]} : vector<31x96xf32> to vector<27x96xf32>
    %c368 = arith.constant 368 : index
    %c0_9 = arith.constant 0 : index
    %22 = vector.load %arg2[%c368, %c0_9] : memref<752x128xf32, #tpu.memory_space<vmem>>, vector<96x128xf32>
    %cst_10 = arith.constant dense<0.000000e+00> : vector<27x128xf32>
    %23 = tpu.matmul %21, %22, %cst_10 {dimension_numbers = #tpu.dot_dimension_numbers<[1], [0], [0], [1], [0, 0, 1, 1], [], []>} : vector<27x96xf32>, vector<96x128xf32>, vector<27x128xf32> -> vector<27x128xf32>
    %24 = arith.addf %20, %23 : vector<27x128xf32>
    %c464 = arith.constant 464 : index
    %c0_11 = arith.constant 0 : index
    %25 = vector.load %arg2[%c464, %c0_11] : memref<752x128xf32, #tpu.memory_space<vmem>>, vector<1x128xf32>
    %26 = vector.broadcast %25 : vector<1x128xf32> to vector<27x128xf32>
    %27 = arith.addf %24, %26 : vector<27x128xf32>
    %cst_12 = arith.constant 0.000000e+00 : f32
    %28 = vector.broadcast %cst_12 : f32 to vector<27x128xf32>
    %29 = arith.maximumf %27, %28 : vector<27x128xf32>
    %30 = vector.extract_strided_slice %29 {offsets = [0, 0], sizes = [27, 72], strides = [1, 1]} : vector<27x128xf32> to vector<27x72xf32>
    %31 = vector.extract_strided_slice %29 {offsets = [0, 12], sizes = [27, 72], strides = [1, 1]} : vector<27x128xf32> to vector<27x72xf32>
    %32 = arith.maximumf %30, %31 : vector<27x72xf32>
    %33 = vector.extract_strided_slice %32 {offsets = [0, 0], sizes = [25, 72], strides = [1, 1]} : vector<27x72xf32> to vector<25x72xf32>
    %34 = vector.extract_strided_slice %32 {offsets = [2, 0], sizes = [25, 72], strides = [1, 1]} : vector<27x72xf32> to vector<25x72xf32>
    %35 = arith.maximumf %33, %34 : vector<25x72xf32>
    %c0_13 = arith.constant 0 : index
    %c0_14 = arith.constant 0 : index
    %36 = vector.load %arg3[%c0_13, %c0_14] : memref<72x384xf32, #tpu.memory_space<vmem>>, vector<72x384xf32>
    %cst_15 = arith.constant dense<0.000000e+00> : vector<25x384xf32>
    %37 = tpu.matmul %35, %36, %cst_15 {dimension_numbers = #tpu.dot_dimension_numbers<[1], [0], [0], [1], [0, 0, 1, 1], [], []>} : vector<25x72xf32>, vector<72x384xf32>, vector<25x384xf32> -> vector<25x384xf32>
    %38 = vector.extract_strided_slice %37 {offsets = [0, 0], sizes = [17, 128], strides = [1, 1]} : vector<25x384xf32> to vector<17x128xf32>
    %39 = vector.extract_strided_slice %37 {offsets = [4, 128], sizes = [17, 128], strides = [1, 1]} : vector<25x384xf32> to vector<17x128xf32>
    %40 = arith.addf %38, %39 : vector<17x128xf32>
    %41 = vector.extract_strided_slice %37 {offsets = [8, 256], sizes = [17, 128], strides = [1, 1]} : vector<25x384xf32> to vector<17x128xf32>
    %42 = arith.addf %40, %41 : vector<17x128xf32>
    %c472 = arith.constant 472 : index
    %c0_16 = arith.constant 0 : index
    %43 = vector.load %arg2[%c472, %c0_16] : memref<752x128xf32, #tpu.memory_space<vmem>>, vector<1x128xf32>
    %44 = vector.broadcast %43 : vector<1x128xf32> to vector<17x128xf32>
    %45 = arith.addf %42, %44 : vector<17x128xf32>
    %cst_17 = arith.constant 0.000000e+00 : f32
    %46 = vector.broadcast %cst_17 : f32 to vector<17x128xf32>
    %47 = arith.maximumf %45, %46 : vector<17x128xf32>
    %c480 = arith.constant 480 : index
    %c0_18 = arith.constant 0 : index
    %48 = vector.load %arg2[%c480, %c0_18] : memref<752x128xf32, #tpu.memory_space<vmem>>, vector<128x128xf32>
    %cst_19 = arith.constant dense<0.000000e+00> : vector<17x128xf32>
    %49 = tpu.matmul %47, %48, %cst_19 {dimension_numbers = #tpu.dot_dimension_numbers<[1], [0], [0], [1], [0, 0, 1, 1], [], []>} : vector<17x128xf32>, vector<128x128xf32>, vector<17x128xf32> -> vector<17x128xf32>
    %c608 = arith.constant 608 : index
    %c0_20 = arith.constant 0 : index
    %50 = vector.load %arg2[%c608, %c0_20] : memref<752x128xf32, #tpu.memory_space<vmem>>, vector<1x128xf32>
    %51 = vector.broadcast %50 : vector<1x128xf32> to vector<17x128xf32>
    %52 = arith.addf %49, %51 : vector<17x128xf32>
    %cst_21 = arith.constant 0.000000e+00 : f32
    %53 = vector.broadcast %cst_21 : f32 to vector<17x128xf32>
    %54 = arith.maximumf %52, %53 : vector<17x128xf32>
    %c616 = arith.constant 616 : index
    %c0_22 = arith.constant 0 : index
    %55 = vector.load %arg2[%c616, %c0_22] : memref<752x128xf32, #tpu.memory_space<vmem>>, vector<128x128xf32>
    %cst_23 = arith.constant dense<0.000000e+00> : vector<17x128xf32>
    %56 = tpu.matmul %54, %55, %cst_23 {dimension_numbers = #tpu.dot_dimension_numbers<[1], [0], [0], [1], [0, 0, 1, 1], [], []>} : vector<17x128xf32>, vector<128x128xf32>, vector<17x128xf32> -> vector<17x128xf32>
    %c744 = arith.constant 744 : index
    %c0_24 = arith.constant 0 : index
    %57 = vector.load %arg2[%c744, %c0_24] : memref<752x128xf32, #tpu.memory_space<vmem>>, vector<1x128xf32>
    %58 = vector.broadcast %57 : vector<1x128xf32> to vector<17x128xf32>
    %59 = arith.addf %56, %58 : vector<17x128xf32>
    %c0_25 = arith.constant 0 : index
    %c0_26 = arith.constant 0 : index
    %60 = vector.load %arg4[%c0_25, %c0_26] : memref<17x128xf32, #tpu.memory_space<vmem>>, vector<17x128xf32>
    tpu.vector_store %arg4[%c0_25, %c0_26], %59 {strides = array<i32>} : memref<17x128xf32, #tpu.memory_space<vmem>>, vector<17x128xf32>,
    return
  }
  func.func @transform_0(%arg0: i32) -> (i32, i32) {
    %c0_i32 = arith.constant 0 : i32
    %c0_i32_0 = arith.constant 0 : i32
    %c0_i32_1 = arith.constant 0 : i32
    return %c0_i32, %c0_i32_0 : i32, i32
  }
  func.func @transform_1(%arg0: i32) -> (i32, i32) {
    %c0_i32 = arith.constant 0 : i32
    %c0_i32_0 = arith.constant 0 : i32
    %c0_i32_1 = arith.constant 0 : i32
    return %c0_i32, %c0_i32_0 : i32, i32
  }
  func.func @transform_2(%arg0: i32) -> (i32, i32) {
    %c0_i32 = arith.constant 0 : i32
    %c0_i32_0 = arith.constant 0 : i32
    %c0_i32_1 = arith.constant 0 : i32
    return %c0_i32, %c0_i32_0 : i32, i32
  }
  func.func @transform_3(%arg0: i32) -> (i32, i32) {
    %c0_i32 = arith.constant 0 : i32
    %c0_i32_0 = arith.constant 0 : i32
    %c0_i32_1 = arith.constant 0 : i32
    return %c0_i32, %c0_i32_0 : i32, i32
  }
}

</mosaic_0001>

<llo_original>
// kernel: net_forward.1
$region0: #{net_forward.1}
  #allocation0 [shape = 'u32[]', space=smem, size = 0x4, offset = 0x4, fixed_abs, tag = 'smem constant byte address 0x4 - core index']
  #allocation1 [shape = 'u32[144,128]{1,0:T(1,128)}', space=vmem, size = 0x12000, scoped, tag = 'internal scratch']
  %s0 = inlined_call_operand.vmem [shape: f32[32,168], index: 0, kind: input, shape index: {}]
  %s1 = inlined_call_operand.vmem [shape: f32[752,128], index: 1, kind: input, shape index: {}]
  %s2 = inlined_call_operand.vmem [shape: f32[72,384], index: 2, kind: input, shape index: {}]
  %s3 = inlined_call_operand.vmem [shape: f32[17,128], index: 3, kind: output, shape index: {}]
  %s4 = sld [smem:[#allocation0]]
  $region22: #{net_forward.1} parent=0
    _
  %s6 = ssub.s32 1, %s4
  %s7 = scalar_select 0, %s6, %s4
  // Predicated region
  $region2: #{net_forward.1} parent=0 // pred_check
    _
  $region3: #{net_forward.1} parent=0 // pred_check_branch
    %9 = sbr.rel (0) target = $region5
  $region4: #{net_forward.1} parent=0 // pred_region
    _
  $region5: #{net_forward.1} parent=0 // pred_fallthru
    _
  // Predicated region
  $region6: #{net_forward.1} parent=0 // pred_check
    _
  $region7: #{net_forward.1} parent=0 // pred_check_branch
    %11 = sbr.rel (0) target = $region9
  $region8: #{net_forward.1} parent=0 // pred_region
    _
  $region9: #{net_forward.1} parent=0 // pred_fallthru
    _
  // Predicated region
  $region10: #{net_forward.1} parent=0 // pred_check
    _
  $region11: #{net_forward.1} parent=0 // pred_check_branch
    %13 = sbr.rel (0) target = $region13
  $region12: #{net_forward.1} parent=0 // pred_region
    _
  $region13: #{net_forward.1} parent=0 // pred_fallthru
    _
  %v14 = vld [vmem:[%s0] sm:$0xff]
  %v15 = vld [vmem:[%s0 + $0x8] sm:$0xff]
  %v16 = vld [vmem:[%s0 + $0x10] sm:$0xff]
  %v17 = vld [vmem:[%s0 + $0x18] sm:$0xff]
  %v18 = vld [vmem:[%s0 + $0x20] sm:$0xff]
  %v19 = vld [vmem:[%s0 + $0x28] sm:$0xff]
  %v20 = vld [vmem:[%s0 + $0x30] sm:$0xff]
  %v21 = vld [vmem:[%s0 + $0x38] sm:$0xff]
  %v22 = vld [vmem:[%s1] sm:$0xff]
  %v23 = vld [vmem:[%s1 + $0x8] sm:$0xff]
  %v24 = vld [vmem:[%s1 + $0x10] sm:$0xff]
  %v25 = vld [vmem:[%s1 + $0x18] sm:$0xff]
  %v26 = vld [vmem:[%s1 + $0x20] sm:$0xff]
  %v27 = vld [vmem:[%s1 + $0x28] sm:$0xff]
  %v28 = vld [vmem:[%s1 + $0x30] sm:$0xff]
  %v29 = vld [vmem:[%s1 + $0x38] sm:$0xff]
  %v30 = vld [vmem:[%s1 + $0x40] sm:$0xff]
  %v31 = vld [vmem:[%s1 + $0x48] sm:$0xff]
  %v32 = vld [vmem:[%s1 + $0x50] sm:$0xff]
  %v33 = vld [vmem:[%s1 + $0x58] sm:$0xff]
  %v34 = vld [vmem:[%s1 + $0x60] sm:$0xff]
  %v35 = vld [vmem:[%s1 + $0x68] sm:$0xff]
  %v36 = vld [vmem:[%s1 + $0x70] sm:$0xff]
  %v37 = vld [vmem:[%s1 + $0x78] sm:$0xff]
  %v38 = vld [vmem:[%s1 + $0x80] sm:$0xff]
  %v39 = vld [vmem:[%s1 + $0x88] sm:$0xff]
  %v40 = vld [vmem:[%s1 + $0x90] sm:$0xff]
  %v41 = vld [vmem:[%s1 + $0x98] sm:$0xff]
  %v42 = vld [vmem:[%s1 + $0xa0] sm:$0xff]
  %v43 = vld [vmem:[%s1 + $0xa8] sm:$0x1]
  %v44 = vlaneseq
  %v45 = vshrl.u32 %v44, 7
  %v46 = vsub.s32 0, %v45
  %v47 = vrot.slane %v43, %v46
  %vm48 = vcmask 326656
  %v50 = vsel %vm48, %v15, 0
  %v53 = vsel %vm48, %v17, 0
  %v56 = vsel %vm48, %v19, 0
  %v59 = vsel %vm48, %v21, 0
  %61 = vmatprep.subr.mxu0 0.0
  %62 = vmatpush1.msra.mxu0 %v22
  %63 = vmatprep.subr.mxu0 0.0
  %64 = vmatpush1.msra.mxu0 %v23
  %65 = vmatprep.subr.mxu0 0.0
  %66 = vmatpush1.msra.mxu0 %v24
  %67 = vmatprep.subr.mxu0 0.0
  %68 = vmatpush1.msra.mxu0 %v25
  %69 = vmatprep.subr.mxu0 0.0
  %70 = vmatpush1.msra.mxu0 %v26
  %71 = vmatprep.subr.mxu0 0.0
  %72 = vmatpush1.msra.mxu0 %v27
  %73 = vmatprep.subr.mxu0 0.0
  %74 = vmatpush1.msra.mxu0 %v28
  %75 = vmatprep.subr.mxu0 0.0
  %76 = vmatpush1.msra.mxu0 %v29
  %77 = vmatprep.subr.mxu0 0.0
  %78 = vmatpush1.msra.mxu0 %v30
  %79 = vmatprep.subr.mxu0 0.0
  %80 = vmatpush1.msra.mxu0 %v31
  %81 = vmatprep.subr.mxu0 0.0
  %82 = vmatpush1.msra.mxu0 %v32
  %83 = vmatprep.subr.mxu0 0.0
  %84 = vmatpush1.msra.mxu0 %v33
  %85 = vmatprep.subr.mxu0 0.0
  %86 = vmatpush1.msra.mxu0 %v34
  %87 = vmatprep.subr.mxu0 0.0
  %88 = vmatpush1.msra.mxu0 %v35
  %89 = vmatprep.subr.mxu0 0.0
  %90 = vmatpush1.msra.mxu0 %v36
  %91 = vmatprep.subr.mxu0 0.0
  %92 = vmatpush1.msra.mxu0 %v37
  %93 = vmatprep.subr.mxu0 0.0
  %94 = vmatpush1.msra.mxu0 %v38
  %95 = vmatprep.subr.mxu0 0.0
  %96 = vmatpush1.msra.mxu0 %v39
  %97 = vmatprep.subr.mxu0 0.0
  %98 = vmatpush1.msra.mxu0 %v40
  %99 = vmatprep.subr.mxu0 0.0
  %100 = vmatpush1.msra.mxu0 %v41
  %101 = vmatprep.subr.mxu0 0.0
  %102 = vmatpush1.msra.mxu0 %v42
  %103 = vmatprep.subr.mxu0 0.0
  %104 = vmatpush1.msra.mxu0 0.0
  %105 = vmatprep.subr.mxu0 0.0
  %106 = vmatpush1.msra.mxu0 0.0
  %107 = vmatprep.subr.mxu0 0.0
  %108 = vmatpush1.msra.mxu0 0.0
  %109 = vmatprep.subr.mxu0 0.0
  %110 = vmatpush1.msra.mxu0 0.0
  %111 = vmatprep.subr.mxu0 0.0
  %112 = vmatpush1.msra.mxu0 0.0
  %113 = vmatprep.subr.mxu0 0.0
  %114 = vmatpush1.msra.mxu0 0.0
  %115 = vmatprep.subr.mxu0 0.0
  %116 = vmatpush1.msra.mxu0 0.0
  %117 = vmatprep.subr.mxu0 0.0
  %118 = vmatpush1.msra.mxu0 0.0
  %119 = vmatprep.subr.mxu0 0.0
  %120 = vmatpush1.msra.mxu0 0.0
  %121 = vmatprep.subr.mxu0 0.0
  %122 = vmatpush1.msra.mxu0 0.0
  %123 = vmatprep.subr.mxu0 0.0
  %124 = vmatpush1.msra.mxu0 0.0
  %125 = vmatprep.mubr.f32.mxu0 %v50
  %126 = vmatmul.mubr.f32.gmra.mrb[0].mxu0 %v14
  %v127 = vpop.f32.mrb[0].mxu0
  %v128 = vadd.f32 %v47, %v127
  %v129 = vpop.f32.mrb[0].mxu0
  %130 = vmatprep.mubr.f32.mxu0 %v53
  %131 = vmatmul.mubr.f32.gmra.mrb[0].mxu0 %v16
  %v132 = vpop.f32.mrb[0].mxu0
  %v133 = vadd.f32 %v47, %v132
  %v134 = vpop.f32.mrb[0].mxu0
  %135 = vmatprep.mubr.f32.mxu0 %v56
  %136 = vmatmul.mubr.f32.gmra.mrb[0].mxu0 %v18
  %v137 = vpop.f32.mrb[0].mxu0
  %v138 = vadd.f32 %v47, %v137
  %v139 = vpop.f32.mrb[0].mxu0
  %140 = vmatprep.mubr.f32.mxu0 %v59
  %141 = vmatmul.mubr.f32.gmra.mrb[0].mxu0 %v20
  %v142 = vpop.f32.mrb[0].mxu0
  %v143 = vadd.f32 %v47, %v142
  %v144 = vpop.f32.mrb[0].mxu0
  %145 = vdwg.mxu0
  %v146 = vmax.f32 %v128, 0.0
  %v147 = vmax.f32 %v133, 0.0
  %v148 = vmax.f32 %v138, 0.0
  %v149 = vmax.f32 %v143, 0.0
  %154 = vrot.lane.b32.xlu0 %v146, 122
  %v155 = vpop.permute.xlu0 %154
  %156 = vrot.lane.b32.xlu0 %v147, 122
  %v157 = vpop.permute.xlu0 %156
  %158 = vrot.lane.b32.xlu0 %v148, 122
  %v159 = vpop.permute.xlu0 %158
  %160 = vrot.lane.b32.xlu0 %v149, 122
  %v161 = vpop.permute.xlu0 %160
  %v166 = vmax.f32 %v146, %v155
  %v167 = vmax.f32 %v147, %v157
  %v168 = vmax.f32 %v148, %v159
  %v169 = vmax.f32 %v149, %v161
  %vm174 = vcmask 1046528
  %v175 = vrot.slane %v166, 1
  %v176 = vrot.slane %v167, 1
  %v177 = vsel %vm174, %v175, %v176
  %v178 = vrot.slane %v168, 1
  %v179 = vsel %vm174, %v176, %v178
  %v180 = vrot.slane %v169, 1
  %v181 = vsel %vm174, %v178, %v180
  %v186 = vmax.f32 %v166, %v177
  %v187 = vmax.f32 %v167, %v179
  %v188 = vmax.f32 %v168, %v181
  %v189 = vmax.f32 %v169, %v180
  %v190 = vld [vmem:[%s1 + $0xb0] sm:$0xff]
  %v191 = vld [vmem:[%s1 + $0xb8] sm:$0xff]
  %v192 = vld [vmem:[%s1 + $0xc0] sm:$0xff]
  %v193 = vld [vmem:[%s1 + $0xc8] sm:$0xff]
  %v194 = vld [vmem:[%s1 + $0xd0] sm:$0xff]
  %v195 = vld [vmem:[%s1 + $0xd8] sm:$0xff]
  %v196 = vld [vmem:[%s1 + $0xe0] sm:$0xff]
  %v197 = vld [vmem:[%s1 + $0xe8] sm:$0xff]
  %v198 = vld [vmem:[%s1 + $0xf0] sm:$0xff]
  %v199 = vld [vmem:[%s1 + $0xf8] sm:$0xff]
  %v200 = vld [vmem:[%s1 + $0x100] sm:$0xff]
  %v201 = vld [vmem:[%s1 + $0x108] sm:$0xff]
  %v202 = vld [vmem:[%s1 + $0x110] sm:$0xff]
  %v203 = vld [vmem:[%s1 + $0x118] sm:$0xff]
  %v204 = vld [vmem:[%s1 + $0x120] sm:$0xff]
  %v205 = vld [vmem:[%s1 + $0x128] sm:$0xff]
  %v206 = vld [vmem:[%s1 + $0x130] sm:$0xff]
  %v207 = vld [vmem:[%s1 + $0x138] sm:$0xff]
  %v208 = vld [vmem:[%s1 + $0x140] sm:$0xff]
  %v209 = vld [vmem:[%s1 + $0x148] sm:$0xff]
  %v210 = vld [vmem:[%s1 + $0x150] sm:$0xff]
  %v211 = vld [vmem:[%s1 + $0x158] sm:$0xff]
  %v212 = vld [vmem:[%s1 + $0x160] sm:$0xff]
  %v213 = vld [vmem:[%s1 + $0x168] sm:$0xff]
  %vm218 = vcmask 1045504
  %v219 = vrot.slane %v186, 2
  %v220 = vrot.slane %v187, 2
  %v221 = vsel %vm218, %v219, %v220
  %v222 = vrot.slane %v188, 2
  %v223 = vsel %vm218, %v220, %v222
  %v224 = vrot.slane %v189, 2
  %v225 = vsel %vm218, %v222, %v224
  %vm226 = vcmask 785408
  %v227 = vsel %vm226, %v221, 0
  %v229 = vsel %vm226, %v223, 0
  %v231 = vsel %vm226, %v225, 0
  %v233 = vsel %vm226, %v224, 0
  %235 = vmatprep.subr.mxu0 0.0
  %236 = vmatpush1.msra.mxu0 %v202
  %237 = vmatprep.subr.mxu0 0.0
  %238 = vmatpush1.msra.mxu0 %v203
  %239 = vmatprep.subr.mxu0 0.0
  %240 = vmatpush1.msra.mxu0 %v204
  %241 = vmatprep.subr.mxu0 0.0
  %242 = vmatpush1.msra.mxu0 %v205
  %243 = vmatprep.subr.mxu0 0.0
  %244 = vmatpush1.msra.mxu0 %v206
  %245 = vmatprep.subr.mxu0 0.0
  %246 = vmatpush1.msra.mxu0 %v207
  %247 = vmatprep.subr.mxu0 0.0
  %248 = vmatpush1.msra.mxu0 %v208
  %249 = vmatprep.subr.mxu0 0.0
  %250 = vmatpush1.msra.mxu0 %v209
  %251 = vmatprep.subr.mxu0 0.0
  %252 = vmatpush1.msra.mxu0 %v210
  %253 = vmatprep.subr.mxu0 0.0
  %254 = vmatpush1.msra.mxu0 %v211
  %255 = vmatprep.subr.mxu0 0.0
  %256 = vmatpush1.msra.mxu0 %v212
  %257 = vmatprep.subr.mxu0 0.0
  %258 = vmatpush1.msra.mxu0 %v213
  %259 = vmatprep.subr.mxu0 0.0
  %260 = vmatpush1.msra.mxu0 0.0
  %261 = vmatprep.subr.mxu0 0.0
  %262 = vmatpush1.msra.mxu0 0.0
  %263 = vmatprep.subr.mxu0 0.0
  %264 = vmatpush1.msra.mxu0 0.0
  %265 = vmatprep.subr.mxu0 0.0
  %266 = vmatpush1.msra.mxu0 0.0
  %267 = vmatprep.subr.mxu0 0.0
  %268 = vmatpush1.msra.mxu0 0.0
  %269 = vmatprep.subr.mxu0 0.0
  %270 = vmatpush1.msra.mxu0 0.0
  %271 = vmatprep.subr.mxu0 0.0
  %272 = vmatpush1.msra.mxu0 0.0
  %273 = vmatprep.subr.mxu0 0.0
  %274 = vmatpush1.msra.mxu0 0.0
  %275 = vmatprep.subr.mxu0 0.0
  %276 = vmatpush1.msra.mxu0 0.0
  %277 = vmatprep.subr.mxu0 0.0
  %278 = vmatpush1.msra.mxu0 0.0
  %279 = vmatprep.subr.mxu0 0.0
  %280 = vmatpush1.msra.mxu0 0.0
  %281 = vmatprep.subr.mxu0 0.0
  %282 = vmatpush1.msra.mxu0 0.0
  %283 = vmatprep.subr.mxu0 0.0
  %284 = vmatpush1.msra.mxu0 0.0
  %285 = vmatprep.subr.mxu0 0.0
  %286 = vmatpush1.msra.mxu0 0.0
  %287 = vmatprep.subr.mxu0 0.0
  %288 = vmatpush1.msra.mxu0 0.0
  %289 = vmatprep.subr.mxu0 0.0
  %290 = vmatpush1.msra.mxu0 0.0
  %291 = vmatprep.subr.mxu0 0.0
  %292 = vmatpush1.msra.mxu0 0.0
  %293 = vmatprep.subr.mxu0 0.0
  %294 = vmatpush1.msra.mxu0 0.0
  %295 = vmatprep.subr.mxu0 0.0
  %296 = vmatpush1.msra.mxu0 0.0
  %297 = vmatprep.subr.mxu0 0.0
  %298 = vmatpush1.msra.mxu0 0.0
  %299 = vmatprep.mubr.f32.mxu0 0.0
  %300 = vmatmul.mubr.f32.gmra.mrb[0].mxu0 %v227
  %v301 = vpop.f32.mrb[0].mxu0
  %v302 = vadd.f32 0.0, %v301
  %v303 = vpop.f32.mrb[0].mxu0
  %304 = vmatprep.mubr.f32.mxu0 0.0
  %305 = vmatmul.mubr.f32.gmra.mrb[0].mxu0 %v229
  %v306 = vpop.f32.mrb[0].mxu0
  %v307 = vadd.f32 0.0, %v306
  %v308 = vpop.f32.mrb[0].mxu0
  %309 = vmatprep.mubr.f32.mxu0 0.0
  %310 = vmatmul.mubr.f32.gmra.mrb[0].mxu0 %v231
  %v311 = vpop.f32.mrb[0].mxu0
  %v312 = vadd.f32 0.0, %v311
  %v313 = vpop.f32.mrb[0].mxu0
  %314 = vmatprep.mubr.f32.mxu0 0.0
  %315 = vmatmul.mubr.f32.gmra.mrb[0].mxu0 %v233
  %v316 = vpop.f32.mrb[0].mxu0
  %v317 = vadd.f32 0.0, %v316
  %v318 = vpop.f32.mrb[0].mxu0
  %319 = vdwg.mxu0
  %v320 = vsel %vm226, %v186, 0
  %v322 = vsel %vm226, %v187, 0
  %v324 = vsel %vm226, %v188, 0
  %v326 = vsel %vm226, %v189, 0
  %328 = vmatprep.subr.mxu0 0.0
  %329 = vmatpush1.msra.mxu0 %v190
  %330 = vmatprep.subr.mxu0 0.0
  %331 = vmatpush1.msra.mxu0 %v191
  %332 = vmatprep.subr.mxu0 0.0
  %333 = vmatpush1.msra.mxu0 %v192
  %334 = vmatprep.subr.mxu0 0.0
  %335 = vmatpush1.msra.mxu0 %v193
  %336 = vmatprep.subr.mxu0 0.0
  %337 = vmatpush1.msra.mxu0 %v194
  %338 = vmatprep.subr.mxu0 0.0
  %339 = vmatpush1.msra.mxu0 %v195
  %340 = vmatprep.subr.mxu0 0.0
  %341 = vmatpush1.msra.mxu0 %v196
  %342 = vmatprep.subr.mxu0 0.0
  %343 = vmatpush1.msra.mxu0 %v197
  %344 = vmatprep.subr.mxu0 0.0
  %345 = vmatpush1.msra.mxu0 %v198
  %346 = vmatprep.subr.mxu0 0.0
  %347 = vmatpush1.msra.mxu0 %v199
  %348 = vmatprep.subr.mxu0 0.0
  %349 = vmatpush1.msra.mxu0 %v200
  %350 = vmatprep.subr.mxu0 0.0
  %351 = vmatpush1.msra.mxu0 %v201
  %352 = vmatprep.subr.mxu0 0.0
  %353 = vmatpush1.msra.mxu0 0.0
  %354 = vmatprep.subr.mxu0 0.0
  %355 = vmatpush1.msra.mxu0 0.0
  %356 = vmatprep.subr.mxu0 0.0
  %357 = vmatpush1.msra.mxu0 0.0
  %358 = vmatprep.subr.mxu0 0.0
  %359 = vmatpush1.msra.mxu0 0.0
  %360 = vmatprep.subr.mxu0 0.0
  %361 = vmatpush1.msra.mxu0 0.0
  %362 = vmatprep.subr.mxu0 0.0
  %363 = vmatpush1.msra.mxu0 0.0
  %364 = vmatprep.subr.mxu0 0.0
  %365 = vmatpush1.msra.mxu0 0.0
  %366 = vmatprep.subr.mxu0 0.0
  %367 = vmatpush1.msra.mxu0 0.0
  %368 = vmatprep.subr.mxu0 0.0
  %369 = vmatpush1.msra.mxu0 0.0
  %370 = vmatprep.subr.mxu0 0.0
  %371 = vmatpush1.msra.mxu0 0.0
  %372 = vmatprep.subr.mxu0 0.0
  %373 = vmatpush1.msra.mxu0 0.0
  %374 = vmatprep.subr.mxu0 0.0
  %375 = vmatpush1.msra.mxu0 0.0
  %376 = vmatprep.subr.mxu0 0.0
  %377 = vmatpush1.msra.mxu0 0.0
  %378 = vmatprep.subr.mxu0 0.0
  %379 = vmatpush1.msra.mxu0 0.0
  %380 = vmatprep.subr.mxu0 0.0
  %381 = vmatpush1.msra.mxu0 0.0
  %382 = vmatprep.subr.mxu0 0.0
  %383 = vmatpush1.msra.mxu0 0.0
  %384 = vmatprep.subr.mxu0 0.0
  %385 = vmatpush1.msra.mxu0 0.0
  %386 = vmatprep.subr.mxu0 0.0
  %387 = vmatpush1.msra.mxu0 0.0
  %388 = vmatprep.subr.mxu0 0.0
  %389 = vmatpush1.msra.mxu0 0.0
  %390 = vmatprep.subr.mxu0 0.0
  %391 = vmatpush1.msra.mxu0 0.0
  %392 = vmatprep.mubr.f32.mxu0 0.0
  %393 = vmatmul.mubr.f32.gmra.mrb[0].mxu0 %v320
  %v394 = vpop.f32.mrb[0].mxu0
  %v395 = vadd.f32 %v302, %v394
  %v396 = vpop.f32.mrb[0].mxu0
  %397 = vmatprep.mubr.f32.mxu0 0.0
  %398 = vmatmul.mubr.f32.gmra.mrb[0].mxu0 %v322
  %v399 = vpop.f32.mrb[0].mxu0
  %v400 = vadd.f32 %v307, %v399
  %v401 = vpop.f32.mrb[0].mxu0
  %402 = vmatprep.mubr.f32.mxu0 0.0
  %403 = vmatmul.mubr.f32.gmra.mrb[0].mxu0 %v324
  %v404 = vpop.f32.mrb[0].mxu0
  %v405 = vadd.f32 %v312, %v404
  %v406 = vpop.f32.mrb[0].mxu0
  %407 = vmatprep.mubr.f32.mxu0 0.0
  %408 = vmatmul.mubr.f32.gmra.mrb[0].mxu0 %v326
  %v409 = vpop.f32.mrb[0].mxu0
  %v410 = vadd.f32 %v317, %v409
  %v411 = vpop.f32.mrb[0].mxu0
  %412 = vdwg.mxu0
  %v413 = vld [vmem:[%s1 + $0x170] sm:$0xff]
  %v414 = vld [vmem:[%s1 + $0x178] sm:$0xff]
  %v415 = vld [vmem:[%s1 + $0x180] sm:$0xff]
  %v416 = vld [vmem:[%s1 + $0x188] sm:$0xff]
  %v417 = vld [vmem:[%s1 + $0x190] sm:$0xff]
  %v418 = vld [vmem:[%s1 + $0x198] sm:$0xff]
  %v419 = vld [vmem:[%s1 + $0x1a0] sm:$0xff]
  %v420 = vld [vmem:[%s1 + $0x1a8] sm:$0xff]
  %v421 = vld [vmem:[%s1 + $0x1b0] sm:$0xff]
  %v422 = vld [vmem:[%s1 + $0x1b8] sm:$0xff]
  %v423 = vld [vmem:[%s1 + $0x1c0] sm:$0xff]
  %v424 = vld [vmem:[%s1 + $0x1c8] sm:$0xff]
  %vm425 = vcmask 1043456
  %v426 = vrot.slane %v186, 4
  %v427 = vrot.slane %v187, 4
  %v428 = vsel %vm425, %v426, %v427
  %v429 = vrot.slane %v188, 4
  %v430 = vsel %vm425, %v427, %v429
  %v431 = vrot.slane %v189, 4
  %v432 = vsel %vm425, %v429, %v431
  %v433 = vsel %vm226, %v428, 0
  %v435 = vsel %vm226, %v430, 0
  %v437 = vsel %vm226, %v432, 0
  %v439 = vsel %vm226, %v431, 0
  %441 = vmatprep.subr.mxu0 0.0
  %442 = vmatpush1.msra.mxu0 %v413
  %443 = vmatprep.subr.mxu0 0.0
  %444 = vmatpush1.msra.mxu0 %v414
  %445 = vmatprep.subr.mxu0 0.0
  %446 = vmatpush1.msra.mxu0 %v415
  %447 = vmatprep.subr.mxu0 0.0
  %448 = vmatpush1.msra.mxu0 %v416
  %449 = vmatprep.subr.mxu0 0.0
  %450 = vmatpush1.msra.mxu0 %v417
  %451 = vmatprep.subr.mxu0 0.0
  %452 = vmatpush1.msra.mxu0 %v418
  %453 = vmatprep.subr.mxu0 0.0
  %454 = vmatpush1.msra.mxu0 %v419
  %455 = vmatprep.subr.mxu0 0.0
  %456 = vmatpush1.msra.mxu0 %v420
  %457 = vmatprep.subr.mxu0 0.0
  %458 = vmatpush1.msra.mxu0 %v421
  %459 = vmatprep.subr.mxu0 0.0
  %460 = vmatpush1.msra.mxu0 %v422
  %461 = vmatprep.subr.mxu0 0.0
  %462 = vmatpush1.msra.mxu0 %v423
  %463 = vmatprep.subr.mxu0 0.0
  %464 = vmatpush1.msra.mxu0 %v424
  %465 = vmatprep.subr.mxu0 0.0
  %466 = vmatpush1.msra.mxu0 0.0
  %467 = vmatprep.subr.mxu0 0.0
  %468 = vmatpush1.msra.mxu0 0.0
  %469 = vmatprep.subr.mxu0 0.0
  %470 = vmatpush1.msra.mxu0 0.0
  %471 = vmatprep.subr.mxu0 0.0
  %472 = vmatpush1.msra.mxu0 0.0
  %473 = vmatprep.subr.mxu0 0.0
  %474 = vmatpush1.msra.mxu0 0.0
  %475 = vmatprep.subr.mxu0 0.0
  %476 = vmatpush1.msra.mxu0 0.0
  %477 = vmatprep.subr.mxu0 0.0
  %478 = vmatpush1.msra.mxu0 0.0
  %479 = vmatprep.subr.mxu0 0.0
  %480 = vmatpush1.msra.mxu0 0.0
  %481 = vmatprep.subr.mxu0 0.0
  %482 = vmatpush1.msra.mxu0 0.0
  %483 = vmatprep.subr.mxu0 0.0
  %484 = vmatpush1.msra.mxu0 0.0
  %485 = vmatprep.subr.mxu0 0.0
  %486 = vmatpush1.msra.mxu0 0.0
  %487 = vmatprep.subr.mxu0 0.0
  %488 = vmatpush1.msra.mxu0 0.0
  %489 = vmatprep.subr.mxu0 0.0
  %490 = vmatpush1.msra.mxu0 0.0
  %491 = vmatprep.subr.mxu0 0.0
  %492 = vmatpush1.msra.mxu0 0.0
  %493 = vmatprep.subr.mxu0 0.0
  %494 = vmatpush1.msra.mxu0 0.0
  %495 = vmatprep.subr.mxu0 0.0
  %496 = vmatpush1.msra.mxu0 0.0
  %497 = vmatprep.subr.mxu0 0.0
  %498 = vmatpush1.msra.mxu0 0.0
  %499 = vmatprep.subr.mxu0 0.0
  %500 = vmatpush1.msra.mxu0 0.0
  %501 = vmatprep.subr.mxu0 0.0
  %502 = vmatpush1.msra.mxu0 0.0
  %503 = vmatprep.subr.mxu0 0.0
  %504 = vmatpush1.msra.mxu0 0.0
  %505 = vmatprep.mubr.f32.mxu0 0.0
  %506 = vmatmul.mubr.f32.gmra.mrb[0].mxu0 %v433
  %v507 = vpop.f32.mrb[0].mxu0
  %v508 = vadd.f32 0.0, %v507
  %v509 = vpop.f32.mrb[0].mxu0
  %510 = vmatprep.mubr.f32.mxu0 0.0
  %511 = vmatmul.mubr.f32.gmra.mrb[0].mxu0 %v435
  %v512 = vpop.f32.mrb[0].mxu0
  %v513 = vadd.f32 0.0, %v512
  %v514 = vpop.f32.mrb[0].mxu0
  %515 = vmatprep.mubr.f32.mxu0 0.0
  %516 = vmatmul.mubr.f32.gmra.mrb[0].mxu0 %v437
  %v517 = vpop.f32.mrb[0].mxu0
  %v518 = vadd.f32 0.0, %v517
  %v519 = vpop.f32.mrb[0].mxu0
  %520 = vmatprep.mubr.f32.mxu0 0.0
  %521 = vmatmul.mubr.f32.gmra.mrb[0].mxu0 %v439
  %v522 = vpop.f32.mrb[0].mxu0
  %v523 = vadd.f32 0.0, %v522
  %v524 = vpop.f32.mrb[0].mxu0
  %525 = vdwg.mxu0
  %v526 = vadd.f32 %v395, %v508
  %v527 = vadd.f32 %v400, %v513
  %v528 = vadd.f32 %v405, %v518
  %v529 = vadd.f32 %v410, %v523
  %v530 = vld [vmem:[%s1 + $0x1d0] sm:$0x1]
  %v531 = vlaneseq
  %v532 = vshrl.u32 %v531, 7
  %v533 = vsub.s32 0, %v532
  %v534 = vrot.slane %v530, %v533
  %v535 = vadd.f32 %v526, %v534
  %v536 = vadd.f32 %v527, %v534
  %v537 = vadd.f32 %v528, %v534
  %v538 = vadd.f32 %v529, %v534
  %v539 = vmax.f32 %v535, 0.0
  %v540 = vmax.f32 %v536, 0.0
  %v541 = vmax.f32 %v537, 0.0
  %v542 = vmax.f32 %v538, 0.0
  %547 = vrot.lane.b32.xlu0 %v539, 116
  %v548 = vpop.permute.xlu0 %547
  %549 = vrot.lane.b32.xlu0 %v540, 116
  %v550 = vpop.permute.xlu0 %549
  %551 = vrot.lane.b32.xlu0 %v541, 116
  %v552 = vpop.permute.xlu0 %551
  %553 = vrot.lane.b32.xlu0 %v542, 116
  %v554 = vpop.permute.xlu0 %553
  %v559 = vmax.f32 %v539, %v548
  %v560 = vmax.f32 %v540, %v550
  %v561 = vmax.f32 %v541, %v552
  %v562 = vmax.f32 %v542, %v554
  %v567 = vrot.slane %v559, 2
  %v568 = vrot.slane %v560, 2
  %v569 = vsel %vm218, %v567, %v568
  %v570 = vrot.slane %v561, 2
  %v571 = vsel %vm218, %v568, %v570
  %v572 = vrot.slane %v562, 2
  %v573 = vsel %vm218, %v570, %v572
  %v578 = vmax.f32 %v559, %v569
  %v579 = vmax.f32 %v560, %v571
  %v580 = vmax.f32 %v561, %v573
  %v581 = vmax.f32 %v562, %v572
  %v582 = vld [vmem:[%s2] sm:$0xff]
  %v583 = vld [vmem:[%s2 + $0x8] sm:$0xff]
  %v584 = vld [vmem:[%s2 + $0x10] sm:$0xff]
  %v585 = vld [vmem:[%s2 + $0x18] sm:$0xff]
  %v586 = vld [vmem:[%s2 + $0x20] sm:$0xff]
  %v587 = vld [vmem:[%s2 + $0x28] sm:$0xff]
  %v588 = vld [vmem:[%s2 + $0x30] sm:$0xff]
  %v589 = vld [vmem:[%s2 + $0x38] sm:$0xff]
  %v590 = vld [vmem:[%s2 + $0x40] sm:$0xff]
  %v591 = vld [vmem:[%s2 + $0x48] sm:$0xff]
  %v592 = vld [vmem:[%s2 + $0x50] sm:$0xff]
  %v593 = vld [vmem:[%s2 + $0x58] sm:$0xff]
  %v594 = vld [vmem:[%s2 + $0x60] sm:$0xff]
  %v595 = vld [vmem:[%s2 + $0x68] sm:$0xff]
  %v596 = vld [vmem:[%s2 + $0x70] sm:$0xff]
  %v597 = vld [vmem:[%s2 + $0x78] sm:$0xff]
  %v598 = vld [vmem:[%s2 + $0x80] sm:$0xff]
  %v599 = vld [vmem:[%s2 + $0x88] sm:$0xff]
  %v600 = vld [vmem:[%s2 + $0x90] sm:$0xff]
  %v601 = vld [vmem:[%s2 + $0x98] sm:$0xff]
  %v602 = vld [vmem:[%s2 + $0xa0] sm:$0xff]
  %v603 = vld [vmem:[%s2 + $0xa8] sm:$0xff]
  %v604 = vld [vmem:[%s2 + $0xb0] sm:$0xff]
  %v605 = vld [vmem:[%s2 + $0xb8] sm:$0xff]
  %v606 = vld [vmem:[%s2 + $0xc0] sm:$0xff]
  %v607 = vld [vmem:[%s2 + $0xc8] sm:$0xff]
  %v608 = vld [vmem:[%s2 + $0xd0] sm:$0xff]
  %vm609 = vcmask 588800
  %v611 = vsel %vm609, %v578, 0
  %v614 = vsel %vm609, %v579, 0
  %v617 = vsel %vm609, %v580, 0
  %v620 = vsel %vm609, %v581, 0
  %622 = vmatprep.subr.mxu0 %v583
  %623 = vmatpush1.msra.mxu0 %v582
  %624 = vmatprep.subr.mxu0 %v586
  %625 = vmatpush1.msra.mxu0 %v585
  %626 = vmatprep.subr.mxu0 %v589
  %627 = vmatpush1.msra.mxu0 %v588
  %628 = vmatprep.subr.mxu0 %v592
  %629 = vmatpush1.msra.mxu0 %v591
  %630 = vmatprep.subr.mxu0 %v595
  %631 = vmatpush1.msra.mxu0 %v594
  %632 = vmatprep.subr.mxu0 %v598
  %633 = vmatpush1.msra.mxu0 %v597
  %634 = vmatprep.subr.mxu0 %v601
  %635 = vmatpush1.msra.mxu0 %v600
  %636 = vmatprep.subr.mxu0 %v604
  %637 = vmatpush1.msra.mxu0 %v603
  %638 = vmatprep.subr.mxu0 %v607
  %639 = vmatpush1.msra.mxu0 %v606
  %640 = vmatprep.subr.mxu0 0.0
  %641 = vmatpush1.msra.mxu0 0.0
  %642 = vmatprep.subr.mxu0 0.0
  %643 = vmatpush1.msra.mxu0 0.0
  %644 = vmatprep.subr.mxu0 0.0
  %645 = vmatpush1.msra.mxu0 0.0
  %646 = vmatprep.subr.mxu0 0.0
  %647 = vmatpush1.msra.mxu0 0.0
  %648 = vmatprep.subr.mxu0 0.0
  %649 = vmatpush1.msra.mxu0 0.0
  %650 = vmatprep.subr.mxu0 0.0
  %651 = vmatpush1.msra.mxu0 0.0
  %652 = vmatprep.subr.mxu0 0.0
  %653 = vmatpush1.msra.mxu0 0.0
  %654 = vmatprep.subr.mxu0 0.0
  %655 = vmatpush1.msra.mxu0 0.0
  %656 = vmatprep.subr.mxu0 0.0
  %657 = vmatpush1.msra.mxu0 0.0
  %658 = vmatprep.subr.mxu0 0.0
  %659 = vmatpush1.msra.mxu0 0.0
  %660 = vmatprep.subr.mxu0 0.0
  %661 = vmatpush1.msra.mxu0 0.0
  %662 = vmatprep.subr.mxu0 0.0
  %663 = vmatpush1.msra.mxu0 0.0
  %664 = vmatprep.subr.mxu0 0.0
  %665 = vmatpush1.msra.mxu0 0.0
  %666 = vmatprep.subr.mxu0 0.0
  %667 = vmatpush1.msra.mxu0 0.0
  %668 = vmatprep.subr.mxu0 0.0
  %669 = vmatpush1.msra.mxu0 0.0
  %670 = vmatprep.subr.mxu0 0.0
  %671 = vmatpush1.msra.mxu0 0.0
  %672 = vmatprep.subr.mxu0 0.0
  %673 = vmatpush1.msra.mxu0 0.0
  %674 = vmatprep.subr.mxu0 0.0
  %675 = vmatpush1.msra.mxu0 0.0
  %676 = vmatprep.subr.mxu0 0.0
  %677 = vmatpush1.msra.mxu0 0.0
  %678 = vmatprep.subr.mxu0 0.0
  %679 = vmatpush1.msra.mxu0 0.0
  %680 = vmatprep.subr.mxu0 0.0
  %681 = vmatpush1.msra.mxu0 0.0
  %682 = vmatprep.subr.mxu0 0.0
  %683 = vmatpush1.msra.mxu0 0.0
  %684 = vmatprep.subr.mxu0 0.0
  %685 = vmatpush1.msra.mxu0 0.0
  %686 = vmatprep.mubr.f32.mxu0 0.0
  %687 = vmatmul.mubr.f32.gmra.mrb[0].mxu0 %v611
  %v688 = vpop.f32.mrb[0].mxu0
  %v689 = vadd.f32 0.0, %v688
  %v690 = vpop.f32.mrb[0].mxu0
  %v691 = vadd.f32 0.0, %v690
  %692 = vmatprep.mubr.f32.mxu0 0.0
  %693 = vmatmul.mubr.f32.gmra.mrb[0].mxu0 %v614
  %v694 = vpop.f32.mrb[0].mxu0
  %v695 = vadd.f32 0.0, %v694
  %v696 = vpop.f32.mrb[0].mxu0
  %v697 = vadd.f32 0.0, %v696
  %698 = vmatprep.mubr.f32.mxu0 0.0
  %699 = vmatmul.mubr.f32.gmra.mrb[0].mxu0 %v617
  %v700 = vpop.f32.mrb[0].mxu0
  %v701 = vadd.f32 0.0, %v700
  %v702 = vpop.f32.mrb[0].mxu0
  %v703 = vadd.f32 0.0, %v702
  %704 = vmatprep.mubr.f32.mxu0 0.0
  %705 = vmatmul.mubr.f32.gmra.mrb[0].mxu0 %v620
  %v706 = vpop.f32.mrb[0].mxu0
  %v707 = vpop.f32.mrb[0].mxu0
  %708 = vdwg.mxu0
  %709 = vmatprep.subr.mxu0 0.0
  %710 = vmatpush1.msra.mxu0 %v584
  %711 = vmatprep.subr.mxu0 0.0
  %712 = vmatpush1.msra.mxu0 %v587
  %713 = vmatprep.subr.mxu0 0.0
  %714 = vmatpush1.msra.mxu0 %v590
  %715 = vmatprep.subr.mxu0 0.0
  %716 = vmatpush1.msra.mxu0 %v593
  %717 = vmatprep.subr.mxu0 0.0
  %718 = vmatpush1.msra.mxu0 %v596
  %719 = vmatprep.subr.mxu0 0.0
  %720 = vmatpush1.msra.mxu0 %v599
  %721 = vmatprep.subr.mxu0 0.0
  %722 = vmatpush1.msra.mxu0 %v602
  %723 = vmatprep.subr.mxu0 0.0
  %724 = vmatpush1.msra.mxu0 %v605
  %725 = vmatprep.subr.mxu0 0.0
  %726 = vmatpush1.msra.mxu0 %v608
  %727 = vmatprep.subr.mxu0 0.0
  %728 = vmatpush1.msra.mxu0 0.0
  %729 = vmatprep.subr.mxu0 0.0
  %730 = vmatpush1.msra.mxu0 0.0
  %731 = vmatprep.subr.mxu0 0.0
  %732 = vmatpush1.msra.mxu0 0.0
  %733 = vmatprep.subr.mxu0 0.0
  %734 = vmatpush1.msra.mxu0 0.0
  %735 = vmatprep.subr.mxu0 0.0
  %736 = vmatpush1.msra.mxu0 0.0
  %737 = vmatprep.subr.mxu0 0.0
  %738 = vmatpush1.msra.mxu0 0.0
  %739 = vmatprep.subr.mxu0 0.0
  %740 = vmatpush1.msra.mxu0 0.0
  %741 = vmatprep.subr.mxu0 0.0
  %742 = vmatpush1.msra.mxu0 0.0
  %743 = vmatprep.subr.mxu0 0.0
  %744 = vmatpush1.msra.mxu0 0.0
  %745 = vmatprep.subr.mxu0 0.0
  %746 = vmatpush1.msra.mxu0 0.0
  %747 = vmatprep.subr.mxu0 0.0
  %748 = vmatpush1.msra.mxu0 0.0
  %749 = vmatprep.subr.mxu0 0.0
  %750 = vmatpush1.msra.mxu0 0.0
  %751 = vmatprep.subr.mxu0 0.0
  %752 = vmatpush1.msra.mxu0 0.0
  %753 = vmatprep.subr.mxu0 0.0
  %754 = vmatpush1.msra.mxu0 0.0
  %755 = vmatprep.subr.mxu0 0.0
  %756 = vmatpush1.msra.mxu0 0.0
  %757 = vmatprep.subr.mxu0 0.0
  %758 = vmatpush1.msra.mxu0 0.0
  %759 = vmatprep.subr.mxu0 0.0
  %760 = vmatpush1.msra.mxu0 0.0
  %761 = vmatprep.subr.mxu0 0.0
  %762 = vmatpush1.msra.mxu0 0.0
  %763 = vmatprep.subr.mxu0 0.0
  %764 = vmatpush1.msra.mxu0 0.0
  %765 = vmatprep.subr.mxu0 0.0
  %766 = vmatpush1.msra.mxu0 0.0
  %767 = vmatprep.subr.mxu0 0.0
  %768 = vmatpush1.msra.mxu0 0.0
  %769 = vmatprep.subr.mxu0 0.0
  %770 = vmatpush1.msra.mxu0 0.0
  %771 = vmatprep.subr.mxu0 0.0
  %772 = vmatpush1.msra.mxu0 0.0
  %773 = vmatprep.mubr.f32.mxu0 0.0
  %774 = vmatmul.mubr.f32.gmra.mrb[0].mxu0 %v611
  %v775 = vpop.f32.mrb[0].mxu0
  %v776 = vpop.f32.mrb[0].mxu0
  %777 = vmatprep.mubr.f32.mxu0 0.0
  %778 = vmatmul.mubr.f32.gmra.mrb[0].mxu0 %v614
  %v779 = vpop.f32.mrb[0].mxu0
  %v780 = vadd.f32 0.0, %v779
  %v781 = vpop.f32.mrb[0].mxu0
  %782 = vmatprep.mubr.f32.mxu0 0.0
  %783 = vmatmul.mubr.f32.gmra.mrb[0].mxu0 %v617
  %v784 = vpop.f32.mrb[0].mxu0
  %v785 = vadd.f32 0.0, %v784
  %v786 = vpop.f32.mrb[0].mxu0
  %787 = vmatprep.mubr.f32.mxu0 0.0
  %788 = vmatmul.mubr.f32.gmra.mrb[0].mxu0 %v620
  %v789 = vpop.f32.mrb[0].mxu0
  %v790 = vadd.f32 0.0, %v789
  %v791 = vpop.f32.mrb[0].mxu0
  %792 = vdwg.mxu0
  %v796 = vrot.slane %v691, 4
  %v797 = vrot.slane %v697, 4
  %v798 = vsel %vm425, %v796, %v797
  %v799 = vrot.slane %v703, 4
  %v800 = vsel %vm425, %v797, %v799
  %v804 = vadd.f32 %v689, %v798
  %v805 = vadd.f32 %v695, %v800
  %v806 = vadd.f32 %v701, %v799
  %v807 = vadd.f32 %v804, %v780
  %v808 = vadd.f32 %v805, %v785
  %v809 = vadd.f32 %v806, %v790
  %v810 = vld [vmem:[%s1 + $0x1d8] sm:$0x1]
  %v811 = vlaneseq
  %v812 = vshrl.u32 %v811, 7
  %v813 = vsub.s32 0, %v812
  %v814 = vrot.slane %v810, %v813
  %v815 = vadd.f32 %v807, %v814
  %v816 = vadd.f32 %v808, %v814
  %v817 = vadd.f32 %v809, %v814
  %v818 = vmax.f32 %v815, 0.0
  %v819 = vmax.f32 %v816, 0.0
  %v820 = vmax.f32 %v817, 0.0
  %v821 = vld [vmem:[%s1 + $0x1e0] sm:$0xff]
  %v822 = vld [vmem:[%s1 + $0x1e8] sm:$0xff]
  %v823 = vld [vmem:[%s1 + $0x1f0] sm:$0xff]
  %v824 = vld [vmem:[%s1 + $0x1f8] sm:$0xff]
  %v825 = vld [vmem:[%s1 + $0x200] sm:$0xff]
  %v826 = vld [vmem:[%s1 + $0x208] sm:$0xff]
  %v827 = vld [vmem:[%s1 + $0x210] sm:$0xff]
  %v828 = vld [vmem:[%s1 + $0x218] sm:$0xff]
  %v829 = vld [vmem:[%s1 + $0x220] sm:$0xff]
  %v830 = vld [vmem:[%s1 + $0x228] sm:$0xff]
  %v831 = vld [vmem:[%s1 + $0x230] sm:$0xff]
  %v832 = vld [vmem:[%s1 + $0x238] sm:$0xff]
  %v833 = vld [vmem:[%s1 + $0x240] sm:$0xff]
  %v834 = vld [vmem:[%s1 + $0x248] sm:$0xff]
  %v835 = vld [vmem:[%s1 + $0x250] sm:$0xff]
  %v836 = vld [vmem:[%s1 + $0x258] sm:$0xff]
  %v837 = vld [vmem:[%s1 + $0x260] sm:$0x1]
  %v838 = vlaneseq
  %v839 = vshrl.u32 %v838, 7
  %v840 = vsub.s32 0, %v839
  %v841 = vrot.slane %v837, %v840
  %842 = vmatprep.subr.mxu0 0.0
  %843 = vmatpush1.msra.mxu0 %v821
  %844 = vmatprep.subr.mxu0 0.0
  %845 = vmatpush1.msra.mxu0 %v822
  %846 = vmatprep.subr.mxu0 0.0
  %847 = vmatpush1.msra.mxu0 %v823
  %848 = vmatprep.subr.mxu0 0.0
  %849 = vmatpush1.msra.mxu0 %v824
  %850 = vmatprep.subr.mxu0 0.0
  %851 = vmatpush1.msra.mxu0 %v825
  %852 = vmatprep.subr.mxu0 0.0
  %853 = vmatpush1.msra.mxu0 %v826
  %854 = vmatprep.subr.mxu0 0.0
  %855 = vmatpush1.msra.mxu0 %v827
  %856 = vmatprep.subr.mxu0 0.0
  %857 = vmatpush1.msra.mxu0 %v828
  %858 = vmatprep.subr.mxu0 0.0
  %859 = vmatpush1.msra.mxu0 %v829
  %860 = vmatprep.subr.mxu0 0.0
  %861 = vmatpush1.msra.mxu0 %v830
  %862 = vmatprep.subr.mxu0 0.0
  %863 = vmatpush1.msra.mxu0 %v831
  %864 = vmatprep.subr.mxu0 0.0
  %865 = vmatpush1.msra.mxu0 %v832
  %866 = vmatprep.subr.mxu0 0.0
  %867 = vmatpush1.msra.mxu0 %v833
  %868 = vmatprep.subr.mxu0 0.0
  %869 = vmatpush1.msra.mxu0 %v834
  %870 = vmatprep.subr.mxu0 0.0
  %871 = vmatpush1.msra.mxu0 %v835
  %872 = vmatprep.subr.mxu0 0.0
  %873 = vmatpush1.msra.mxu0 %v836
  %874 = vmatprep.subr.mxu0 0.0
  %875 = vmatpush1.msra.mxu0 0.0
  %876 = vmatprep.subr.mxu0 0.0
  %877 = vmatpush1.msra.mxu0 0.0
  %878 = vmatprep.subr.mxu0 0.0
  %879 = vmatpush1.msra.mxu0 0.0
  %880 = vmatprep.subr.mxu0 0.0
  %881 = vmatpush1.msra.mxu0 0.0
  %882 = vmatprep.subr.mxu0 0.0
  %883 = vmatpush1.msra.mxu0 0.0
  %884 = vmatprep.subr.mxu0 0.0
  %885 = vmatpush1.msra.mxu0 0.0
  %886 = vmatprep.subr.mxu0 0.0
  %887 = vmatpush1.msra.mxu0 0.0
  %888 = vmatprep.subr.mxu0 0.0
  %889 = vmatpush1.msra.mxu0 0.0
  %890 = vmatprep.subr.mxu0 0.0
  %891 = vmatpush1.msra.mxu0 0.0
  %892 = vmatprep.subr.mxu0 0.0
  %893 = vmatpush1.msra.mxu0 0.0
  %894 = vmatprep.subr.mxu0 0.0
  %895 = vmatpush1.msra.mxu0 0.0
  %896 = vmatprep.subr.mxu0 0.0
  %897 = vmatpush1.msra.mxu0 0.0
  %898 = vmatprep.subr.mxu0 0.0
  %899 = vmatpush1.msra.mxu0 0.0
  %900 = vmatprep.subr.mxu0 0.0
  %901 = vmatpush1.msra.mxu0 0.0
  %902 = vmatprep.subr.mxu0 0.0
  %903 = vmatpush1.msra.mxu0 0.0
  %904 = vmatprep.subr.mxu0 0.0
  %905 = vmatpush1.msra.mxu0 0.0
  %906 = vmatprep.mubr.f32.mxu0 0.0
  %907 = vmatmul.mubr.f32.gmra.mrb[0].mxu0 %v818
  %v908 = vpop.f32.mrb[0].mxu0
  %v909 = vadd.f32 %v841, %v908
  %v910 = vpop.f32.mrb[0].mxu0
  %911 = vmatprep.mubr.f32.mxu0 0.0
  %912 = vmatmul.mubr.f32.gmra.mrb[0].mxu0 %v819
  %v913 = vpop.f32.mrb[0].mxu0
  %v914 = vadd.f32 %v841, %v913
  %v915 = vpop.f32.mrb[0].mxu0
  %916 = vmatprep.mubr.f32.mxu0 0.0
  %917 = vmatmul.mubr.f32.gmra.mrb[0].mxu0 %v820
  %v918 = vpop.f32.mrb[0].mxu0
  %v919 = vadd.f32 %v841, %v918
  %v920 = vpop.f32.mrb[0].mxu0
  %921 = vdwg.mxu0
  %v922 = vmax.f32 %v909, 0.0
  %v923 = vmax.f32 %v914, 0.0
  %v924 = vmax.f32 %v919, 0.0
  %v925 = vld [vmem:[%s1 + $0x268] sm:$0xff]
  %v926 = vld [vmem:[%s1 + $0x270] sm:$0xff]
  %v927 = vld [vmem:[%s1 + $0x278] sm:$0xff]
  %v928 = vld [vmem:[%s1 + $0x280] sm:$0xff]
  %v929 = vld [vmem:[%s1 + $0x288] sm:$0xff]
  %v930 = vld [vmem:[%s1 + $0x290] sm:$0xff]
  %v931 = vld [vmem:[%s1 + $0x298] sm:$0xff]
  %v932 = vld [vmem:[%s1 + $0x2a0] sm:$0xff]
  %v933 = vld [vmem:[%s1 + $0x2a8] sm:$0xff]
  %v934 = vld [vmem:[%s1 + $0x2b0] sm:$0xff]
  %v935 = vld [vmem:[%s1 + $0x2b8] sm:$0xff]
  %v936 = vld [vmem:[%s1 + $0x2c0] sm:$0xff]
  %v937 = vld [vmem:[%s1 + $0x2c8] sm:$0xff]
  %v938 = vld [vmem:[%s1 + $0x2d0] sm:$0xff]
  %v939 = vld [vmem:[%s1 + $0x2d8] sm:$0xff]
  %v940 = vld [vmem:[%s1 + $0x2e0] sm:$0xff]
  %v941 = vld [vmem:[%s1 + $0x2e8] sm:$0x1]
  %v942 = vlaneseq
  %v943 = vshrl.u32 %v942, 7
  %v944 = vsub.s32 0, %v943
  %v945 = vrot.slane %v941, %v944
  %946 = vmatprep.subr.mxu0 0.0
  %947 = vmatpush1.msra.mxu0 %v925
  %948 = vmatprep.subr.mxu0 0.0
  %949 = vmatpush1.msra.mxu0 %v926
  %950 = vmatprep.subr.mxu0 0.0
  %951 = vmatpush1.msra.mxu0 %v927
  %952 = vmatprep.subr.mxu0 0.0
  %953 = vmatpush1.msra.mxu0 %v928
  %954 = vmatprep.subr.mxu0 0.0
  %955 = vmatpush1.msra.mxu0 %v929
  %956 = vmatprep.subr.mxu0 0.0
  %957 = vmatpush1.msra.mxu0 %v930
  %958 = vmatprep.subr.mxu0 0.0
  %959 = vmatpush1.msra.mxu0 %v931
  %960 = vmatprep.subr.mxu0 0.0
  %961 = vmatpush1.msra.mxu0 %v932
  %962 = vmatprep.subr.mxu0 0.0
  %963 = vmatpush1.msra.mxu0 %v933
  %964 = vmatprep.subr.mxu0 0.0
  %965 = vmatpush1.msra.mxu0 %v934
  %966 = vmatprep.subr.mxu0 0.0
  %967 = vmatpush1.msra.mxu0 %v935
  %968 = vmatprep.subr.mxu0 0.0
  %969 = vmatpush1.msra.mxu0 %v936
  %970 = vmatprep.subr.mxu0 0.0
  %971 = vmatpush1.msra.mxu0 %v937
  %972 = vmatprep.subr.mxu0 0.0
  %973 = vmatpush1.msra.mxu0 %v938
  %974 = vmatprep.subr.mxu0 0.0
  %975 = vmatpush1.msra.mxu0 %v939
  %976 = vmatprep.subr.mxu0 0.0
  %977 = vmatpush1.msra.mxu0 %v940
  %978 = vmatprep.subr.mxu0 0.0
  %979 = vmatpush1.msra.mxu0 0.0
  %980 = vmatprep.subr.mxu0 0.0
  %981 = vmatpush1.msra.mxu0 0.0
  %982 = vmatprep.subr.mxu0 0.0
  %983 = vmatpush1.msra.mxu0 0.0
  %984 = vmatprep.subr.mxu0 0.0
  %985 = vmatpush1.msra.mxu0 0.0
  %986 = vmatprep.subr.mxu0 0.0
  %987 = vmatpush1.msra.mxu0 0.0
  %988 = vmatprep.subr.mxu0 0.0
  %989 = vmatpush1.msra.mxu0 0.0
  %990 = vmatprep.subr.mxu0 0.0
  %991 = vmatpush1.msra.mxu0 0.0
  %992 = vmatprep.subr.mxu0 0.0
  %993 = vmatpush1.msra.mxu0 0.0
  %994 = vmatprep.subr.mxu0 0.0
  %995 = vmatpush1.msra.mxu0 0.0
  %996 = vmatprep.subr.mxu0 0.0
  %997 = vmatpush1.msra.mxu0 0.0
  %998 = vmatprep.subr.mxu0 0.0
  %999 = vmatpush1.msra.mxu0 0.0
  %1000 = vmatprep.subr.mxu0 0.0
  %1001 = vmatpush1.msra.mxu0 0.0
  %1002 = vmatprep.subr.mxu0 0.0
  %1003 = vmatpush1.msra.mxu0 0.0
  %1004 = vmatprep.subr.mxu0 0.0
  %1005 = vmatpush1.msra.mxu0 0.0
  %1006 = vmatprep.subr.mxu0 0.0
  %1007 = vmatpush1.msra.mxu0 0.0
  %1008 = vmatprep.subr.mxu0 0.0
  %1009 = vmatpush1.msra.mxu0 0.0
  %1010 = vmatprep.mubr.f32.mxu0 0.0
  %1011 = vmatmul.mubr.f32.gmra.mrb[0].mxu0 %v922
  %v1012 = vpop.f32.mrb[0].mxu0
  %v1013 = vadd.f32 %v945, %v1012
  %v1014 = vpop.f32.mrb[0].mxu0
  %1015 = vmatprep.mubr.f32.mxu0 0.0
  %1016 = vmatmul.mubr.f32.gmra.mrb[0].mxu0 %v923
  %v1017 = vpop.f32.mrb[0].mxu0
  %v1018 = vadd.f32 %v945, %v1017
  %v1019 = vpop.f32.mrb[0].mxu0
  %1020 = vmatprep.mubr.f32.mxu0 0.0
  %1021 = vmatmul.mubr.f32.gmra.mrb[0].mxu0 %v924
  %v1022 = vpop.f32.mrb[0].mxu0
  %v1023 = vadd.f32 %v945, %v1022
  %v1024 = vpop.f32.mrb[0].mxu0
  %1025 = vdwg.mxu0
  %1026 = vst [vmem:[%s3] sm:$0xff] %v1013
  %1027 = vst [vmem:[%s3 + $0x8] sm:$0xff] %v1018
  %1028 = vst [vmem:[%s3 + $0x10] sm:$0x1] %v1023
  // Predicated region
  $region14: #{net_forward.1} parent=0 // pred_check
    _
  $region15: #{net_forward.1} parent=0 // pred_check_branch
    %1030 = sbr.rel (0) target = $region17
  $region16: #{net_forward.1} parent=0 // pred_region
    _
  $region17: #{net_forward.1} parent=0 // pred_fallthru
    _
  // Predicated region
  $region18: #{net_forward.1} parent=0 // pred_check
    _
  $region19: #{net_forward.1} parent=0 // pred_check_branch
    %1032 = sbr.rel (0) target = $region21
  $region20: #{net_forward.1} parent=0 // pred_region
    _
  $region21: #{net_forward.1} parent=0 // pred_fallthru
    _

</llo_original>
